<compile_context>
chip_gen: v7x
topology: tpu7x:2x2x1
jax: 0.10.0
libtpu: 0.0.40
codegen_flags: <defaults>
</compile_context>

<pallas_src>
import functools

import jax
import jax.numpy as jnp
from jax.experimental import pallas as pl
from jax.experimental.pallas import tpu as pltpu


def _round_up(x, m):
    return ((x + m - 1) // m) * m


def _pick_tm(M, Kf_pad, C_pad, vmem_budget_bytes=16 * 1024 * 1024):
    """Largest row tile (multiple of 8, <= 1024) whose double-buffered
    footprint in the fused conv+stats kernel fits the VMEM budget
    (budget chosen conservatively so it also fits v7x's 64 MiB VMEM)."""
    per_row = 2 * Kf_pad * 2 + 2 * C_pad * 4           # bf16 patches (2 bufs) + f32 y (2 bufs)
    resident = 2 * Kf_pad * C_pad * 2 + 8 * C_pad * 4  # bf16 weights (2 bufs) + stats/scratch
    tm = max(8, (vmem_budget_bytes - resident) // per_row)
    tm = min(tm, 1024, _round_up(M, 8))
    return int((tm // 8) * 8)


# ---------------------------------------------------------------------------
# Kernel 1: fused conv-as-matmul + BatchNorm batch statistics.
#   patches: [M_pad, Kf_pad] bf16    weights: [Kf_pad, C_pad] bf16
#   gamma/beta: [1, C_pad] f32
#   outputs: y [M_pad, C_pad] f32,  stats [2, C_pad] f32  (row0=scale, row1=shift)
# Grid: (M_pad // tm,)  -- "arbitrary": stats accumulate across it.
# ---------------------------------------------------------------------------
def conv_stats_kernel(p_ref, w_ref, g_ref, b_ref, y_ref, stats_ref,
                      sum_ref, sq_ref, *, m_real, eps):
    i = pl.program_id(0)

    @pl.when(i == 0)
    def _():
        sum_ref[...] = jnp.zeros_like(sum_ref)
        sq_ref[...] = jnp.zeros_like(sq_ref)

    y = jnp.dot(p_ref[...], w_ref[...], preferred_element_type=jnp.float32)
    y_ref[...] = y
    # single-pass sum / sum-of-squares (padded rows/channels contribute exact 0)
    sum_ref[...] += jnp.sum(y, axis=0, keepdims=True)
    sq_ref[...] += jnp.sum(y * y, axis=0, keepdims=True)

    @pl.when(i == pl.num_programs(0) - 1)
    def _():
        inv_m = 1.0 / m_real
        mean = sum_ref[...] * inv_m
        var = jnp.maximum(sq_ref[...] * inv_m - mean * mean, 0.0)  # biased var
        inv = jax.lax.rsqrt(var + eps)
        scale = g_ref[...] * inv
        shift = b_ref[...] - mean * scale
        stats_ref[...] = jnp.concatenate([scale, shift], axis=0)


def conv_with_stats(patches, w_mat, gamma, beta, *, tm, m_real, eps):
    Mp, Kp = patches.shape
    Cp = w_mat.shape[1]
    assert Mp % tm == 0
    kernel = functools.partial(conv_stats_kernel,
                               m_real=float(m_real), eps=float(eps))
    return pl.pallas_call(
        kernel,
        out_shape=(
            jax.ShapeDtypeStruct((Mp, Cp), jnp.float32),
            jax.ShapeDtypeStruct((2, Cp), jnp.float32),
        ),
        grid_spec=pltpu.PrefetchScalarGridSpec(
            num_scalar_prefetch=0,
            grid=(Mp // tm,),
            in_specs=[
                pl.BlockSpec((tm, Kp), lambda i: (i, 0)),
                pl.BlockSpec((Kp, Cp), lambda i: (0, 0)),
                pl.BlockSpec((1, Cp), lambda i: (0, 0)),
                pl.BlockSpec((1, Cp), lambda i: (0, 0)),
            ],
            out_specs=(
                pl.BlockSpec((tm, Cp), lambda i: (i, 0)),
                pl.BlockSpec((2, Cp), lambda i: (0, 0)),
            ),
            scratch_shapes=[
                pltpu.VMEM((1, Cp), jnp.float32),
                pltpu.VMEM((1, Cp), jnp.float32),
            ],
        ),
        compiler_params=pltpu.CompilerParams(
            dimension_semantics=("arbitrary",),
            vmem_limit_bytes=32 * 1024 * 1024,
        ),
    )(patches, w_mat, gamma, beta)


# ---------------------------------------------------------------------------
# Kernel 2: normalize pass -- out = y * scale + shift, tiled over M.
# ---------------------------------------------------------------------------
def normalize_kernel(y_ref, s_ref, o_ref):
    o_ref[...] = y_ref[...] * s_ref[0:1, :] + s_ref[1:2, :]


def normalize(y, stats, *, tm):
    Mp, Cp = y.shape
    assert Mp % tm == 0
    return pl.pallas_call(
        normalize_kernel,
        out_shape=jax.ShapeDtypeStruct((Mp, Cp), jnp.float32),
        grid_spec=pltpu.PrefetchScalarGridSpec(
            num_scalar_prefetch=0,
            grid=(Mp // tm,),
            in_specs=[
                pl.BlockSpec((tm, Cp), lambda i: (i, 0)),
                pl.BlockSpec((2, Cp), lambda i: (0, 0)),
            ],
            out_specs=pl.BlockSpec((tm, Cp), lambda i: (i, 0)),
        ),
        compiler_params=pltpu.CompilerParams(
            dimension_semantics=("parallel",),
            vmem_limit_bytes=32 * 1024 * 1024,
        ),
    )(y, stats)


# ---------------------------------------------------------------------------
# Glue: im2col + parameter plumbing (plain JAX, not the hot path)
# ---------------------------------------------------------------------------
def im2col_nhwc(x_nhwc, ksize, stride, padding):
    """x_nhwc: [N, H, W, Cin] -> patches [N*Ho*Wo, ksize*ksize*Cin].
    Feature order per row is (kh, kw, cin), matching the weight reshape below."""
    N, H, W, Cin = x_nhwc.shape
    Ho = (H + 2 * padding - ksize) // stride + 1
    Wo = (W + 2 * padding - ksize) // stride + 1
    xp = jnp.pad(x_nhwc, ((0, 0), (padding, padding), (padding, padding), (0, 0)))
    slabs = []
    for kh in range(ksize):
        for kw in range(ksize):
            slabs.append(
                xp[:, kh:kh + stride * Ho:stride, kw:kw + stride * Wo:stride, :]
            )  # [N, Ho, Wo, Cin]
    patches = jnp.stack(slabs, axis=3)  # [N, Ho, Wo, kh*kw, Cin]
    patches = patches.reshape(N * Ho * Wo, ksize * ksize * Cin)
    return patches, Ho, Wo


class DownSamplePallas:
    """Equivalent of the PyTorch DownSample module (Conv2d + BatchNorm2d,
    forward in training mode i.e. batch statistics)."""

    def __init__(self, inch, outch, ksize, stride, padding, key):
        self.inch, self.outch = inch, outch
        self.ksize, self.stride, self.padding = ksize, stride, padding
        k_w, k_b, k_g, k_bt = jax.random.split(key, 4)
        fan_in = inch * ksize * ksize
        bound = 1.0 / (fan_in ** 0.5)
        # Conv2d weight: PyTorch layout [outch, inch, kh, kw]
        self.w = jax.random.uniform(
            k_w, (outch, inch, ksize, ksize), jnp.float32, -bound, bound)
        # Conv bias exists in the module but is cancelled exactly by the
        # train-mode BatchNorm mean subtraction -> not fed to the kernels.
        self.b = jax.random.uniform(k_b, (outch,), jnp.float32, -bound, bound)
        # BatchNorm affine params (nontrivial but deterministic)
        self.gamma = 1.0 + 0.1 * jax.random.normal(k_g, (outch,), jnp.float32)
        self.beta = 0.1 * jax.random.normal(k_bt, (outch,), jnp.float32)
        self.eps = 1e-5

    def __call__(self, x_nchw):
        N, Cin, H, W = x_nchw.shape
        assert Cin == self.inch
        Cout = self.outch

        x_nhwc = jnp.transpose(x_nchw, (0, 2, 3, 1))
        patches, Ho, Wo = im2col_nhwc(x_nhwc, self.ksize, self.stride, self.padding)
        M, Kf = patches.shape

        # Pad feature / channel axes to lane-dense multiples of 128, rows to tm.
        Kf_pad = _round_up(Kf, 128)
        C_pad = _round_up(Cout, 128)
        tm = _pick_tm(M, Kf_pad, C_pad)
        M_pad = pl.cdiv(M, tm) * tm

        patches_p = jnp.zeros((M_pad, Kf_pad), jnp.bfloat16)
        patches_p = patches_p.at[:M, :Kf].set(patches.astype(jnp.bfloat16))

        # weight [outch, inch, kh, kw] -> [kh, kw, inch, outch] -> [Kf, outch]
        w_mat = jnp.transpose(self.w, (2, 3, 1, 0)).reshape(Kf, Cout)
        w_p = jnp.zeros((Kf_pad, C_pad), jnp.bfloat16)
        w_p = w_p.at[:Kf, :Cout].set(w_mat.astype(jnp.bfloat16))

        gamma_p = jnp.zeros((1, C_pad), jnp.float32).at[0, :Cout].set(self.gamma)
        beta_p = jnp.zeros((1, C_pad), jnp.float32).at[0, :Cout].set(self.beta)

        # Pass 1: conv matmul + fused BN statistics (scale/shift folded in).
        y, stats = conv_with_stats(patches_p, w_p, gamma_p, beta_p,
                                   tm=tm, m_real=M, eps=self.eps)
        # Pass 2: single streaming normalize.
        out = normalize(y, stats, tm=tm)

        out = out[:M, :Cout].reshape(N, Ho, Wo, Cout)
        return jnp.transpose(out, (0, 3, 1, 2))  # back to NCHW


# ---------------------------------------------------------------------------
# Reference (pure JAX) for correctness check.  Conv inputs are cast to bf16 to
# match the kernel's MXU precision; BN math stays f32.  Includes the conv bias
# (which the kernel drops) -- it cancels under train-mode BN.
# ---------------------------------------------------------------------------
def reference_downsample(mod, x_nchw):
    y = jax.lax.conv_general_dilated(
        x_nchw.astype(jnp.bfloat16), mod.w.astype(jnp.bfloat16),
        window_strides=(mod.stride, mod.stride),
        padding=[(mod.padding, mod.padding), (mod.padding, mod.padding)],
        dimension_numbers=("NCHW", "OIHW", "NCHW"),
        preferred_element_type=jnp.float32,
    ) + mod.b.reshape(1, -1, 1, 1)
    mean = jnp.mean(y, axis=(0, 2, 3), keepdims=True)
    var = jnp.mean((y - mean) ** 2, axis=(0, 2, 3), keepdims=True)
    return (y - mean) * jax.lax.rsqrt(var + mod.eps) * \
        mod.gamma.reshape(1, -1, 1, 1) + mod.beta.reshape(1, -1, 1, 1)


if __name__ == "__main__":
    key = jax.random.PRNGKey(0)
    k_x, k_p = jax.random.split(key)

    # Small shapes consistent with a ResNet downsample block
    N, Cin, H, W = 2, 4, 16, 16
    Cout, ksize, stride, padding = 8, 3, 2, 1

    x = jax.random.normal(k_x, (N, Cin, H, W), jnp.float32)
    mod = DownSamplePallas(Cin, Cout, ksize, stride, padding, k_p)

    out = mod(x)
    out = jax.block_until_ready(out)

    ref = reference_downsample(mod, x)
    assert out.shape == ref.shape == (N, Cout, H // 2, W // 2)
    assert jnp.max(jnp.abs(out - ref)) < 1e-3

    print("KERNEL_OK")
</pallas_src>

<mosaic_0001>
module attributes {stable_mosaic.version = 11 : i64} {
  func.func @conv_stats_kernel(%arg0: i32, %arg1: memref<128x128xbf16, #tpu.memory_space<vmem>>, %arg2: memref<128x128xbf16, #tpu.memory_space<vmem>>, %arg3: memref<1x128xf32, #tpu.memory_space<vmem>>, %arg4: memref<1x128xf32, #tpu.memory_space<vmem>>, %arg5: memref<128x128xf32, #tpu.memory_space<vmem>>, %arg6: memref<2x128xf32, #tpu.memory_space<vmem>>, %arg7: memref<1x128xf32, #tpu.memory_space<vmem>>, %arg8: memref<1x128xf32, #tpu.memory_space<vmem>>) attributes {dimension_semantics = [#tpu.dimension_semantics<arbitrary>], iteration_bounds = array<i64: 1>, scalar_prefetch = 0 : i64, scratch_operands = 2 : i64, tpu.core_type = #tpu.core_type<tc>, window_params = [{transform_indices = @transform_0, window_bounds = array<i64: 128, 128>}, {pipeline_mode = #tpu.pipeline_mode<synchronous>, transform_indices = @transform_1, window_bounds = array<i64: 128, 128>}, {pipeline_mode = #tpu.pipeline_mode<synchronous>, transform_indices = @transform_2, window_bounds = array<i64: 1, 128>}, {pipeline_mode = #tpu.pipeline_mode<synchronous>, transform_indices = @transform_3, window_bounds = array<i64: 1, 128>}, {transform_indices = @transform_4, window_bounds = array<i64: 128, 128>}, {pipeline_mode = #tpu.pipeline_mode<synchronous>, transform_indices = @transform_5, window_bounds = array<i64: 2, 128>}]} {
    %c0_i32 = arith.constant 0 : i32
    %0 = arith.cmpi eq, %arg0, %c0_i32 : i32
    %1 = arith.extui %0 : i1 to i32
    %c0_i32_0 = arith.constant 0 : i32
    %2 = arith.cmpi ne, %1, %c0_i32_0 : i32
    scf.if %2 {
      %cst_18 = arith.constant 0.000000e+00 : f32
      %21 = vector.broadcast %cst_18 : f32 to vector<1x128xf32>
      %c0_19 = arith.constant 0 : index
      %c0_20 = arith.constant 0 : index
      %22 = vector.load %arg7[%c0_19, %c0_20] : memref<1x128xf32, #tpu.memory_space<vmem>>, vector<1x128xf32>
      tpu.vector_store %arg7[%c0_19, %c0_20], %21 {strides = array<i32>} : memref<1x128xf32, #tpu.memory_space<vmem>>, vector<1x128xf32>,
      %cst_21 = arith.constant 0.000000e+00 : f32
      %23 = vector.broadcast %cst_21 : f32 to vector<1x128xf32>
      %c0_22 = arith.constant 0 : index
      %c0_23 = arith.constant 0 : index
      %24 = vector.load %arg8[%c0_22, %c0_23] : memref<1x128xf32, #tpu.memory_space<vmem>>, vector<1x128xf32>
      tpu.vector_store %arg8[%c0_22, %c0_23], %23 {strides = array<i32>} : memref<1x128xf32, #tpu.memory_space<vmem>>, vector<1x128xf32>,
    } else {
    }
    %c0 = arith.constant 0 : index
    %c0_1 = arith.constant 0 : index
    %3 = vector.load %arg1[%c0, %c0_1] : memref<128x128xbf16, #tpu.memory_space<vmem>>, vector<128x128xbf16>
    %c0_2 = arith.constant 0 : index
    %c0_3 = arith.constant 0 : index
    %4 = vector.load %arg2[%c0_2, %c0_3] : memref<128x128xbf16, #tpu.memory_space<vmem>>, vector<128x128xbf16>
    %cst = arith.constant dense<0.000000e+00> : vector<128x128xf32>
    %5 = tpu.matmul %3, %4, %cst {dimension_numbers = #tpu.dot_dimension_numbers<[1], [0], [0], [1], [0, 0, 1, 1], [], []>} : vector<128x128xbf16>, vector<128x128xbf16>, vector<128x128xf32> -> vector<128x128xf32>
    %c0_4 = arith.constant 0 : index
    %c0_5 = arith.constant 0 : index
    %6 = vector.load %arg5[%c0_4, %c0_5] : memref<128x128xf32, #tpu.memory_space<vmem>>, vector<128x128xf32>
    tpu.vector_store %arg5[%c0_4, %c0_5], %5 {strides = array<i32>} : memref<128x128xf32, #tpu.memory_space<vmem>>, vector<128x128xf32>,
    %c0_6 = arith.constant 0 : index
    %c0_7 = arith.constant 0 : index
    %7 = vector.load %arg7[%c0_6, %c0_7] : memref<1x128xf32, #tpu.memory_space<vmem>>, vector<1x128xf32>
    %cst_8 = arith.constant dense<0.000000e+00> : vector<128xf32>
    %8 = vector.multi_reduction <add>, %5, %cst_8 [0] : vector<128x128xf32> to vector<128xf32>
    %9 = vector.shape_cast %8 : vector<128xf32> to vector<1x128xf32>
    %10 = arith.addf %7, %9 : vector<1x128xf32>
    %c0_9 = arith.constant 0 : index
    %c0_10 = arith.constant 0 : index
    %11 = vector.load %arg7[%c0_9, %c0_10] : memref<1x128xf32, #tpu.memory_space<vmem>>, vector<1x128xf32>
    tpu.vector_store %arg7[%c0_9, %c0_10], %10 {strides = array<i32>} : memref<1x128xf32, #tpu.memory_space<vmem>>, vector<1x128xf32>,
    %c0_11 = arith.constant 0 : index
    %c0_12 = arith.constant 0 : index
    %12 = vector.load %arg8[%c0_11, %c0_12] : memref<1x128xf32, #tpu.memory_space<vmem>>, vector<1x128xf32>
    %13 = arith.mulf %5, %5 : vector<128x128xf32>
    %cst_13 = arith.constant dense<0.000000e+00> : vector<128xf32>
    %14 = vector.multi_reduction <add>, %13, %cst_13 [0] : vector<128x128xf32> to vector<128xf32>
    %15 = vector.shape_cast %14 : vector<128xf32> to vector<1x128xf32>
    %16 = arith.addf %12, %15 : vector<1x128xf32>
    %c0_14 = arith.constant 0 : index
    %c0_15 = arith.constant 0 : index
    %17 = vector.load %arg8[%c0_14, %c0_15] : memref<1x128xf32, #tpu.memory_space<vmem>>, vector<1x128xf32>
    tpu.vector_store %arg8[%c0_14, %c0_15], %16 {strides = array<i32>} : memref<1x128xf32, #tpu.memory_space<vmem>>, vector<1x128xf32>,
    %c0_i32_16 = arith.constant 0 : i32
    %18 = arith.cmpi eq, %arg0, %c0_i32_16 : i32
    %19 = arith.extui %18 : i1 to i32
    %c0_i32_17 = arith.constant 0 : i32
    %20 = arith.cmpi ne, %19, %c0_i32_17 : i32
    scf.if %20 {
      %c0_18 = arith.constant 0 : index
      %c0_19 = arith.constant 0 : index
      %21 = vector.load %arg7[%c0_18, %c0_19] : memref<1x128xf32, #tpu.memory_space<vmem>>, vector<1x128xf32>
      %cst_20 = arith.constant 7.812500e-03 : f32
      %22 = vector.broadcast %cst_20 : f32 to vector<1x128xf32>
      %23 = arith.mulf %21, %22 : vector<1x128xf32>
      %c0_21 = arith.constant 0 : index
      %c0_22 = arith.constant 0 : index
      %24 = vector.load %arg8[%c0_21, %c0_22] : memref<1x128xf32, #tpu.memory_space<vmem>>, vector<1x128xf32>
      %cst_23 = arith.constant 7.812500e-03 : f32
      %25 = vector.broadcast %cst_23 : f32 to vector<1x128xf32>
      %26 = arith.mulf %24, %25 : vector<1x128xf32>
      %27 = arith.mulf %23, %23 : vector<1x128xf32>
      %28 = arith.subf %26, %27 : vector<1x128xf32>
      %cst_24 = arith.constant 0.000000e+00 : f32
      %29 = vector.broadcast %cst_24 : f32 to vector<1x128xf32>
      %30 = arith.maximumf %28, %29 : vector<1x128xf32>
      %cst_25 = arith.constant 9.99999974E-6 : f32
      %31 = vector.broadcast %cst_25 : f32 to vector<1x128xf32>
      %32 = arith.addf %30, %31 : vector<1x128xf32>
      %33 = math.rsqrt %32 : vector<1x128xf32>
      %c0_26 = arith.constant 0 : index
      %c0_27 = arith.constant 0 : index
      %34 = vector.load %arg3[%c0_26, %c0_27] : memref<1x128xf32, #tpu.memory_space<vmem>>, vector<1x128xf32>
      %35 = arith.mulf %34, %33 : vector<1x128xf32>
      %c0_28 = arith.constant 0 : index
      %c0_29 = arith.constant 0 : index
      %36 = vector.load %arg4[%c0_28, %c0_29] : memref<1x128xf32, #tpu.memory_space<vmem>>, vector<1x128xf32>
      %37 = arith.mulf %23, %35 : vector<1x128xf32>
      %38 = arith.subf %36, %37 : vector<1x128xf32>
      %39 = tpu.concatenate %35, %38 in 0 : vector<1x128xf32>, vector<1x128xf32> -> vector<2x128xf32>
      %c0_30 = arith.constant 0 : index
      %c0_31 = arith.constant 0 : index
      %40 = vector.load %arg6[%c0_30, %c0_31] : memref<2x128xf32, #tpu.memory_space<vmem>>, vector<2x128xf32>
      tpu.vector_store %arg6[%c0_30, %c0_31], %39 {strides = array<i32>} : memref<2x128xf32, #tpu.memory_space<vmem>>, vector<2x128xf32>,
    } else {
    }
    return
  }
  func.func @transform_0(%arg0: i32) -> (i32, i32) {
    %c0_i32 = arith.constant 0 : i32
    %c0_i32_0 = arith.constant 0 : i32
    return %arg0, %c0_i32 : i32, i32
  }
  func.func @transform_1(%arg0: i32) -> (i32, i32) {
    %c0_i32 = arith.constant 0 : i32
    %c0_i32_0 = arith.constant 0 : i32
    %c0_i32_1 = arith.constant 0 : i32
    return %c0_i32, %c0_i32_0 : i32, i32
  }
  func.func @transform_2(%arg0: i32) -> (i32, i32) {
    %c0_i32 = arith.constant 0 : i32
    %c0_i32_0 = arith.constant 0 : i32
    %c0_i32_1 = arith.constant 0 : i32
    return %c0_i32, %c0_i32_0 : i32, i32
  }
  func.func @transform_3(%arg0: i32) -> (i32, i32) {
    %c0_i32 = arith.constant 0 : i32
    %c0_i32_0 = arith.constant 0 : i32
    %c0_i32_1 = arith.constant 0 : i32
    return %c0_i32, %c0_i32_0 : i32, i32
  }
  func.func @transform_4(%arg0: i32) -> (i32, i32) {
    %c0_i32 = arith.constant 0 : i32
    %c0_i32_0 = arith.constant 0 : i32
    return %arg0, %c0_i32 : i32, i32
  }
  func.func @transform_5(%arg0: i32) -> (i32, i32) {
    %c0_i32 = arith.constant 0 : i32
    %c0_i32_0 = arith.constant 0 : i32
    %c0_i32_1 = arith.constant 0 : i32
    return %c0_i32, %c0_i32_0 : i32, i32
  }
}

</mosaic_0001>

<llo_original>
// kernel: tpu_custom_call.1
$region0: #{tpu_custom_call.1}
  #allocation0 [shape = 'u32[]', space=smem, size = 0x4, offset = 0x4, fixed_abs, tag = 'smem constant byte address 0x4 - core index']
  #allocation1 [shape = 'u32[144,128]{1,0:T(1,128)}', space=vmem, size = 0x12000, scoped, tag = 'internal scratch']
  #allocation2 [shape = 'f32[1,128]{1,0:T(1,128)}', space=vmem, size = 0x200, scoped, tag = 'scratch operand']
  #allocation3 [shape = 'f32[1,128]{1,0:T(1,128)}', space=vmem, size = 0x200, scoped, tag = 'scratch operand']
  %s0 = inlined_call_operand.hbm [shape: bf16[128,128], index: 0, kind: input, shape index: {}]
  %s1 = inlined_call_operand.hbm [shape: bf16[128,128], index: 1, kind: input, shape index: {}]
  %s2 = inlined_call_operand.vmem [shape: f32[1,128], index: 2, kind: input, shape index: {}]
  %s3 = inlined_call_operand.vmem [shape: f32[1,128], index: 3, kind: input, shape index: {}]
  %s4 = inlined_call_operand.hbm [shape: f32[128,128], index: 4, kind: output, shape index: {0}]
  %s5 = inlined_call_operand.hbm [shape: f32[2,128], index: 5, kind: output, shape index: {1}]
  %6 = xla_tuple %s4, %s5
  %s7 = sld [smem:[#allocation0]]
  $region50: #{tpu_custom_call.1} parent=0
    _
  %s9 = ssub.s32 1, %s7
  %s10 = scalar_select 0, %s9, %s7
  $region1: #{tpu_custom_call.1} parent=0
    #allocation4 [shape = 'u8[32768]{0}', space=vmem, size = 0x8000, scoped, tag = 'input window, operand 0, single buffered']
    #allocation5 [shape = 's32[1]{0}', space=sflag, size = 0x4, scoped, tag = 'scoped memory for tpu_custom_call.1']
    #allocation6 [shape = 's32[1]{0}', space=sflag, size = 0x4, scoped, tag = 'scoped memory for tpu_custom_call.1']
    #allocation7 [shape = 'u8[32768]{0}', space=vmem, size = 0x8000, scoped, tag = 'input window, operand 1, single buffered']
    #allocation8 [shape = 's32[1]{0}', space=sflag, size = 0x4, scoped, tag = 'scoped memory for tpu_custom_call.1']
    #allocation9 [shape = 'u8[65536]{0}', space=vmem, size = 0x10000, scoped, tag = 'output window, operand 0, single buffered']
    #allocation10 [shape = 'u8[1024]{0}', space=vmem, size = 0x400, scoped, tag = 'output window, operand 1, single buffered']
    #allocation11 [shape = 's32[1]{0}', space=sflag, size = 0x4, scoped, tag = 'scoped memory for tpu_custom_call.1']
    %11 = vsyncpa [#allocation5], 0
    %12 = vsyncpa [#allocation8], 0
    %13 = vsyncpa [#allocation6], 0
    %14 = vsyncpa [#allocation11], 0
    // Predicated region
    $region2: #{tpu_custom_call.1} parent=1 // pred_check
      _
    $region3: #{tpu_custom_call.1} parent=1 // pred_check_branch
      %16 = sbr.rel (0) target = $region5
    $region4: #{tpu_custom_call.1} parent=1 // pred_region
      %s18 = ssub.s32 1024, 1024
      %19 = vsyncadd [#allocation5], %s18
      %s20 = sshll.u32 [#allocation4], 4
      %s21 = int_to_ptr.vmem [resolvable:$true] %s20
      %26 = dma.hbm_to_vmem [thread:$0]  %s0, 1024, %s21, [#allocation5], 64, 64, 4
    $region5: #{tpu_custom_call.1} parent=1 // pred_fallthru
      _
    // Predicated region
    $region6: #{tpu_custom_call.1} parent=1 // pred_check
      _
    $region7: #{tpu_custom_call.1} parent=1 // pred_check_branch
      %28 = sbr.rel (0) target = $region9
    $region8: #{tpu_custom_call.1} parent=1 // pred_region
      %s30 = ssub.s32 1024, 1024
      %31 = vsyncadd [#allocation8], %s30
      %s32 = sshll.u32 [#allocation7], 4
      %s33 = int_to_ptr.vmem [resolvable:$true] %s32
      %38 = dma.hbm_to_vmem [thread:$0]  %s1, 1024, %s33, [#allocation8], 64, 64, 4
    $region9: #{tpu_custom_call.1} parent=1 // pred_fallthru
      _
    // Predicated region
    $region10: #{tpu_custom_call.1} parent=1 // pred_check
      _
    $region11: #{tpu_custom_call.1} parent=1 // pred_check_branch
      %40 = sbr.rel (0) target = $region13
    $region12: #{tpu_custom_call.1} parent=1 // pred_region
      _
    $region13: #{tpu_custom_call.1} parent=1 // pred_fallthru
      _
    // Predicated region
    $region14: #{tpu_custom_call.1} parent=1 // pred_check
      _
    $region15: #{tpu_custom_call.1} parent=1 // pred_check_branch
      %42 = sbr.rel (0) target = $region17
    $region16: #{tpu_custom_call.1} parent=1 // pred_region
      _
    $region17: #{tpu_custom_call.1} parent=1 // pred_fallthru
      _
    // Predicated region
    $region18: #{tpu_custom_call.1} parent=1 // pred_check
      _
    $region19: #{tpu_custom_call.1} parent=1 // pred_check_branch
      %44 = sbr.rel (0) target = $region21
    $region20: #{tpu_custom_call.1} parent=1 // pred_region
      %45 = dma.done [#allocation5], 1024
    $region21: #{tpu_custom_call.1} parent=1 // pred_fallthru
      _
    // Predicated region
    $region22: #{tpu_custom_call.1} parent=1 // pred_check
      _
    $region23: #{tpu_custom_call.1} parent=1 // pred_check_branch
      %47 = sbr.rel (0) target = $region25
    $region24: #{tpu_custom_call.1} parent=1 // pred_region
      %48 = dma.done [#allocation8], 1024
    $region25: #{tpu_custom_call.1} parent=1 // pred_fallthru
      _
    %p50 = scmp.eq.s32.totalorder 0, 0
    // Predicated region
    $region26: #{tpu_custom_call.1} parent=1 // pred_check
      %p51 = pneg %p50
    $region27: #{tpu_custom_call.1} parent=1 // pred_check_branch
      %53 = sbr.rel (%p51) target = $region29
    $region28: #{tpu_custom_call.1} parent=1 // pred_region
      %54 = vst [vmem:[#allocation2] sm:$0x1] 0.0
      %55 = vst [vmem:[#allocation3] sm:$0x1] 0.0
    $region29: #{tpu_custom_call.1} parent=1 // pred_fallthru
      _
    %v56 = vld [vmem:[#allocation4] sm:$0xf]
    %v57 = vld [vmem:[#allocation4 + $0x4] sm:$0xf]
    %v58 = vld [vmem:[#allocation4 + $0x8] sm:$0xf]
    %v59 = vld [vmem:[#allocation4 + $0xc] sm:$0xf]
    %v60 = vld [vmem:[#allocation4 + $0x10] sm:$0xf]
    %v61 = vld [vmem:[#allocation4 + $0x14] sm:$0xf]
    %v62 = vld [vmem:[#allocation4 + $0x18] sm:$0xf]
    %v63 = vld [vmem:[#allocation4 + $0x1c] sm:$0xf]
    %v64 = vld [vmem:[#allocation4 + $0x20] sm:$0xf]
    %v65 = vld [vmem:[#allocation4 + $0x24] sm:$0xf]
    %v66 = vld [vmem:[#allocation4 + $0x28] sm:$0xf]
    %v67 = vld [vmem:[#allocation4 + $0x2c] sm:$0xf]
    %v68 = vld [vmem:[#allocation4 + $0x30] sm:$0xf]
    %v69 = vld [vmem:[#allocation4 + $0x34] sm:$0xf]
    %v70 = vld [vmem:[#allocation4 + $0x38] sm:$0xf]
    %v71 = vld [vmem:[#allocation4 + $0x3c] sm:$0xf]
    %v72 = vld [vmem:[#allocation7] sm:$0xf]
    %v73 = vld [vmem:[#allocation7 + $0x4] sm:$0xf]
    %v74 = vld [vmem:[#allocation7 + $0x8] sm:$0xf]
    %v75 = vld [vmem:[#allocation7 + $0xc] sm:$0xf]
    %v76 = vld [vmem:[#allocation7 + $0x10] sm:$0xf]
    %v77 = vld [vmem:[#allocation7 + $0x14] sm:$0xf]
    %v78 = vld [vmem:[#allocation7 + $0x18] sm:$0xf]
    %v79 = vld [vmem:[#allocation7 + $0x1c] sm:$0xf]
    %v80 = vld [vmem:[#allocation7 + $0x20] sm:$0xf]
    %v81 = vld [vmem:[#allocation7 + $0x24] sm:$0xf]
    %v82 = vld [vmem:[#allocation7 + $0x28] sm:$0xf]
    %v83 = vld [vmem:[#allocation7 + $0x2c] sm:$0xf]
    %v84 = vld [vmem:[#allocation7 + $0x30] sm:$0xf]
    %v85 = vld [vmem:[#allocation7 + $0x34] sm:$0xf]
    %v86 = vld [vmem:[#allocation7 + $0x38] sm:$0xf]
    %v87 = vld [vmem:[#allocation7 + $0x3c] sm:$0xf]
    %v104 = vunpack.c.l.b16 %v56
    %v105 = vunpack.c.l.b16 %v57
    %v106 = vunpack.c.l.b16 %v58
    %v107 = vunpack.c.l.b16 %v59
    %v108 = vunpack.c.l.b16 %v60
    %v109 = vunpack.c.l.b16 %v61
    %v110 = vunpack.c.l.b16 %v62
    %v111 = vunpack.c.l.b16 %v63
    %v112 = vunpack.c.l.b16 %v64
    %v113 = vunpack.c.l.b16 %v65
    %v114 = vunpack.c.l.b16 %v66
    %v115 = vunpack.c.l.b16 %v67
    %v116 = vunpack.c.l.b16 %v68
    %v117 = vunpack.c.l.b16 %v69
    %v118 = vunpack.c.l.b16 %v70
    %v119 = vunpack.c.l.b16 %v71
    %v120 = vpack.c.b16 %v105, %v104
    %v121 = vpack.c.b16 %v107, %v106
    %v122 = vpack.c.b16 %v109, %v108
    %v123 = vpack.c.b16 %v111, %v110
    %v124 = vpack.c.b16 %v113, %v112
    %v125 = vpack.c.b16 %v115, %v114
    %v126 = vpack.c.b16 %v117, %v116
    %v127 = vpack.c.b16 %v119, %v118
    %v152 = vunpack.c.l.b16 %v72
    %v153 = vunpack.c.l.b16 %v73
    %v154 = vunpack.c.l.b16 %v74
    %v155 = vunpack.c.l.b16 %v75
    %v156 = vunpack.c.l.b16 %v76
    %v157 = vunpack.c.l.b16 %v77
    %v158 = vunpack.c.l.b16 %v78
    %v159 = vunpack.c.l.b16 %v79
    %v160 = vunpack.c.l.b16 %v80
    %v161 = vunpack.c.l.b16 %v81
    %v162 = vunpack.c.l.b16 %v82
    %v163 = vunpack.c.l.b16 %v83
    %v164 = vunpack.c.l.b16 %v84
    %v165 = vunpack.c.l.b16 %v85
    %v166 = vunpack.c.l.b16 %v86
    %v167 = vunpack.c.l.b16 %v87
    %v168 = vpack.c.b16 %v153, %v152
    %v169 = vpack.c.b16 %v155, %v154
    %v170 = vpack.c.b16 %v157, %v156
    %v171 = vpack.c.b16 %v159, %v158
    %v172 = vpack.c.b16 %v161, %v160
    %v173 = vpack.c.b16 %v163, %v162
    %v174 = vpack.c.b16 %v165, %v164
    %v175 = vpack.c.b16 %v167, %v166
    %184 = vmatprep.subr.bf16.mxu0 0
    %185 = vmatpush1.bf16.msra.mxu0 %v168
    %186 = vmatprep.subr.bf16.mxu0 0
    %187 = vmatpush1.bf16.msra.mxu0 %v169
    %188 = vmatprep.subr.bf16.mxu0 0
    %189 = vmatpush1.bf16.msra.mxu0 %v170
    %190 = vmatprep.subr.bf16.mxu0 0
    %191 = vmatpush1.bf16.msra.mxu0 %v171
    %192 = vmatprep.subr.bf16.mxu0 0
    %193 = vmatpush1.bf16.msra.mxu0 %v172
    %194 = vmatprep.subr.bf16.mxu0 0
    %195 = vmatpush1.bf16.msra.mxu0 %v173
    %196 = vmatprep.subr.bf16.mxu0 0
    %197 = vmatpush1.bf16.msra.mxu0 %v174
    %198 = vmatprep.subr.bf16.mxu0 0
    %199 = vmatpush1.bf16.msra.mxu0 %v175
    %200 = vmatprep.subr.bf16.mxu0 0
    %201 = vmatpush1.bf16.msra.mxu0 0
    %202 = vmatprep.subr.bf16.mxu0 0
    %203 = vmatpush1.bf16.msra.mxu0 0
    %204 = vmatprep.subr.bf16.mxu0 0
    %205 = vmatpush1.bf16.msra.mxu0 0
    %206 = vmatprep.subr.bf16.mxu0 0
    %207 = vmatpush1.bf16.msra.mxu0 0
    %208 = vmatprep.subr.bf16.mxu0 0
    %209 = vmatpush1.bf16.msra.mxu0 0
    %210 = vmatprep.subr.bf16.mxu0 0
    %211 = vmatpush1.bf16.msra.mxu0 0
    %212 = vmatprep.subr.bf16.mxu0 0
    %213 = vmatpush1.bf16.msra.mxu0 0
    %214 = vmatprep.subr.bf16.mxu0 0
    %215 = vmatpush1.bf16.msra.mxu0 0
    %216 = vmatprep.mubr.bf16.mxu0 0
    %217 = vmatmul.mubr.bf16.gmra.mrb[0].mxu0 %v120
    %v218 = vpop.f32.mrb[0].mxu0
    %v219 = vadd.f32 0.0, %v218
    %v220 = vpop.f32.mrb[0].mxu0
    %v221 = vpop.f32.mrb[0].mxu0
    %v222 = vadd.f32 0.0, %v221
    %v223 = vpop.f32.mrb[0].mxu0
    %224 = vmatprep.mubr.bf16.mxu0 0
    %225 = vmatmul.mubr.bf16.gmra.mrb[0].mxu0 %v121
    %v226 = vpop.f32.mrb[0].mxu0
    %v227 = vadd.f32 0.0, %v226
    %v228 = vpop.f32.mrb[0].mxu0
    %v229 = vpop.f32.mrb[0].mxu0
    %v230 = vadd.f32 0.0, %v229
    %v231 = vpop.f32.mrb[0].mxu0
    %232 = vmatprep.mubr.bf16.mxu0 0
    %233 = vmatmul.mubr.bf16.gmra.mrb[0].mxu0 %v122
    %v234 = vpop.f32.mrb[0].mxu0
    %v235 = vadd.f32 0.0, %v234
    %v236 = vpop.f32.mrb[0].mxu0
    %v237 = vpop.f32.mrb[0].mxu0
    %v238 = vadd.f32 0.0, %v237
    %v239 = vpop.f32.mrb[0].mxu0
    %240 = vmatprep.mubr.bf16.mxu0 0
    %241 = vmatmul.mubr.bf16.gmra.mrb[0].mxu0 %v123
    %v242 = vpop.f32.mrb[0].mxu0
    %v243 = vadd.f32 0.0, %v242
    %v244 = vpop.f32.mrb[0].mxu0
    %v245 = vpop.f32.mrb[0].mxu0
    %v246 = vadd.f32 0.0, %v245
    %v247 = vpop.f32.mrb[0].mxu0
    %248 = vmatprep.mubr.bf16.mxu0 0
    %249 = vmatmul.mubr.bf16.gmra.mrb[0].mxu0 %v124
    %v250 = vpop.f32.mrb[0].mxu0
    %v251 = vadd.f32 0.0, %v250
    %v252 = vpop.f32.mrb[0].mxu0
    %v253 = vpop.f32.mrb[0].mxu0
    %v254 = vadd.f32 0.0, %v253
    %v255 = vpop.f32.mrb[0].mxu0
    %256 = vmatprep.mubr.bf16.mxu0 0
    %257 = vmatmul.mubr.bf16.gmra.mrb[0].mxu0 %v125
    %v258 = vpop.f32.mrb[0].mxu0
    %v259 = vadd.f32 0.0, %v258
    %v260 = vpop.f32.mrb[0].mxu0
    %v261 = vpop.f32.mrb[0].mxu0
    %v262 = vadd.f32 0.0, %v261
    %v263 = vpop.f32.mrb[0].mxu0
    %264 = vmatprep.mubr.bf16.mxu0 0
    %265 = vmatmul.mubr.bf16.gmra.mrb[0].mxu0 %v126
    %v266 = vpop.f32.mrb[0].mxu0
    %v267 = vadd.f32 0.0, %v266
    %v268 = vpop.f32.mrb[0].mxu0
    %v269 = vpop.f32.mrb[0].mxu0
    %v270 = vadd.f32 0.0, %v269
    %v271 = vpop.f32.mrb[0].mxu0
    %272 = vmatprep.mubr.bf16.mxu0 0
    %273 = vmatmul.mubr.bf16.gmra.mrb[0].mxu0 %v127
    %v274 = vpop.f32.mrb[0].mxu0
    %v275 = vadd.f32 0.0, %v274
    %v276 = vpop.f32.mrb[0].mxu0
    %v277 = vpop.f32.mrb[0].mxu0
    %v278 = vadd.f32 0.0, %v277
    %v279 = vpop.f32.mrb[0].mxu0
    %280 = vdwg.mxu0
    %281 = vst [vmem:[#allocation9] sm:$0xff] %v219
    %282 = vst [vmem:[#allocation9 + $0x8] sm:$0xff] %v222
    %283 = vst [vmem:[#allocation9 + $0x10] sm:$0xff] %v227
    %284 = vst [vmem:[#allocation9 + $0x18] sm:$0xff] %v230
    %285 = vst [vmem:[#allocation9 + $0x20] sm:$0xff] %v235
    %286 = vst [vmem:[#allocation9 + $0x28] sm:$0xff] %v238
    %287 = vst [vmem:[#allocation9 + $0x30] sm:$0xff] %v243
    %288 = vst [vmem:[#allocation9 + $0x38] sm:$0xff] %v246
    %289 = vst [vmem:[#allocation9 + $0x40] sm:$0xff] %v251
    %290 = vst [vmem:[#allocation9 + $0x48] sm:$0xff] %v254
    %291 = vst [vmem:[#allocation9 + $0x50] sm:$0xff] %v259
    %292 = vst [vmem:[#allocation9 + $0x58] sm:$0xff] %v262
    %293 = vst [vmem:[#allocation9 + $0x60] sm:$0xff] %v267
    %294 = vst [vmem:[#allocation9 + $0x68] sm:$0xff] %v270
    %295 = vst [vmem:[#allocation9 + $0x70] sm:$0xff] %v275
    %296 = vst [vmem:[#allocation9 + $0x78] sm:$0xff] %v278
    %v297 = vld [vmem:[#allocation2] sm:$0x1]
    %v298 = vadd.f32 %v219, %v222
    %v299 = vadd.f32 %v298, %v227
    %v300 = vadd.f32 %v299, %v230
    %v301 = vadd.f32 %v300, %v235
    %v302 = vadd.f32 %v301, %v238
    %v303 = vadd.f32 %v302, %v243
    %v304 = vadd.f32 %v303, %v246
    %v305 = vadd.f32 %v304, %v251
    %v306 = vadd.f32 %v305, %v254
    %v307 = vadd.f32 %v306, %v259
    %v308 = vadd.f32 %v307, %v262
    %v309 = vadd.f32 %v308, %v267
    %v310 = vadd.f32 %v309, %v270
    %v311 = vadd.f32 %v310, %v275
    %v312 = vadd.f32 %v311, %v278
    %v313 = vrot.slane %v312, 4
    %v314 = vadd.f32 %v312, %v313
    %v315 = vrot.slane %v314, 2
    %v316 = vadd.f32 %v314, %v315
    %v317 = vrot.slane %v316, 1
    %v318 = vadd.f32 %v316, %v317
    %v319 = vadd.f32 %v297, %v318
    %320 = vst [vmem:[#allocation2] sm:$0x1] %v319
    %v321 = vld [vmem:[#allocation3] sm:$0x1]
    %v322 = vmul.f32 %v219, %v219
    %v323 = vmul.f32 %v222, %v222
    %v324 = vmul.f32 %v227, %v227
    %v325 = vmul.f32 %v230, %v230
    %v326 = vmul.f32 %v235, %v235
    %v327 = vmul.f32 %v238, %v238
    %v328 = vmul.f32 %v243, %v243
    %v329 = vmul.f32 %v246, %v246
    %v330 = vmul.f32 %v251, %v251
    %v331 = vmul.f32 %v254, %v254
    %v332 = vmul.f32 %v259, %v259
    %v333 = vmul.f32 %v262, %v262
    %v334 = vmul.f32 %v267, %v267
    %v335 = vmul.f32 %v270, %v270
    %v336 = vmul.f32 %v275, %v275
    %v337 = vmul.f32 %v278, %v278
    %v338 = vadd.f32 %v322, %v323
    %v339 = vadd.f32 %v338, %v324
    %v340 = vadd.f32 %v339, %v325
    %v341 = vadd.f32 %v340, %v326
    %v342 = vadd.f32 %v341, %v327
    %v343 = vadd.f32 %v342, %v328
    %v344 = vadd.f32 %v343, %v329
    %v345 = vadd.f32 %v344, %v330
    %v346 = vadd.f32 %v345, %v331
    %v347 = vadd.f32 %v346, %v332
    %v348 = vadd.f32 %v347, %v333
    %v349 = vadd.f32 %v348, %v334
    %v350 = vadd.f32 %v349, %v335
    %v351 = vadd.f32 %v350, %v336
    %v352 = vadd.f32 %v351, %v337
    %v353 = vrot.slane %v352, 4
    %v354 = vadd.f32 %v352, %v353
    %v355 = vrot.slane %v354, 2
    %v356 = vadd.f32 %v354, %v355
    %v357 = vrot.slane %v356, 1
    %v358 = vadd.f32 %v356, %v357
    %v359 = vadd.f32 %v321, %v358
    %360 = vst [vmem:[#allocation3] sm:$0x1] %v359
    // Predicated region
    $region30: #{tpu_custom_call.1} parent=1 // pred_check
      %p361 = pneg %p50
    $region31: #{tpu_custom_call.1} parent=1 // pred_check_branch
      %363 = sbr.rel (%p361) target = $region33
    $region32: #{tpu_custom_call.1} parent=1 // pred_region
      %v364 = vld [vmem:[#allocation2] sm:$0x1]
      %v365 = vmul.f32 %v364, 0.0078125
      %v366 = vld [vmem:[#allocation3] sm:$0x1]
      %v367 = vmul.f32 %v366, 0.0078125
      %v368 = vmul.f32 %v365, %v365
      %v369 = vsub.f32 %v367, %v368
      %v370 = vmax.f32 %v369, 0.0
      %v371 = vadd.f32 %v370, 1e-05
      %v372 = vrsqrt.pop %v371
      %v373 = vld [vmem:[%s2] sm:$0x1]
      %v374 = vmul.f32 %v373, %v372
      %v375 = vld [vmem:[%s3] sm:$0x1]
      %v376 = vmul.f32 %v365, %v374
      %v377 = vsub.f32 %v375, %v376
      %v379 = vlaneseq
      %v380 = vshrl.u32 %v379, 7
      %v381 = vsub.s32 0, %v380
      %v382 = vrot.slane %v377, %v381
      %vm384 = vcmask 1040384
      %v385 = vsel %vm384, %v374, %v382
      %386 = vst [vmem:[#allocation10] sm:$0x3] %v385
    $region33: #{tpu_custom_call.1} parent=1 // pred_fallthru
      _
    // Predicated region
    $region34: #{tpu_custom_call.1} parent=1 // pred_check
      _
    $region35: #{tpu_custom_call.1} parent=1 // pred_check_branch
      %388 = sbr.rel (0) target = $region37
    $region36: #{tpu_custom_call.1} parent=1 // pred_region
      %s390 = ssub.s32 2048, 2048
      %391 = vsyncadd [#allocation6], %s390
      %s392 = sshll.u32 [#allocation9], 4
      %s393 = int_to_ptr.vmem [resolvable:$true] %s392
      %398 = dma.vmem_to_hbm [thread:$0]  %s393, 2048, %s4, [#allocation6], 128, 128, 8
    $region37: #{tpu_custom_call.1} parent=1 // pred_fallthru
      _
    // Predicated region
    $region38: #{tpu_custom_call.1} parent=1 // pred_check
      _
    $region39: #{tpu_custom_call.1} parent=1 // pred_check_branch
      %400 = sbr.rel (0) target = $region41
    $region40: #{tpu_custom_call.1} parent=1 // pred_region
      %s402 = ssub.s32 32, 32
      %403 = vsyncadd [#allocation11], %s402
      %s405 = sshll.u32 [#allocation10], 4
      %s406 = int_to_ptr.vmem [resolvable:$true] %s405
      %408 = dma.vmem_to_hbm [thread:$0]  %s406, 32, %s5, [#allocation11]
    $region41: #{tpu_custom_call.1} parent=1 // pred_fallthru
      _
    // Predicated region
    $region42: #{tpu_custom_call.1} parent=1 // pred_check
      _
    $region43: #{tpu_custom_call.1} parent=1 // pred_check_branch
      %410 = sbr.rel (0) target = $region45
    $region44: #{tpu_custom_call.1} parent=1 // pred_region
      %411 = dma.done [#allocation6], 2048
    $region45: #{tpu_custom_call.1} parent=1 // pred_fallthru
      _
    // Predicated region
    $region46: #{tpu_custom_call.1} parent=1 // pred_check
      _
    $region47: #{tpu_custom_call.1} parent=1 // pred_check_branch
      %413 = sbr.rel (0) target = $region49
    $region48: #{tpu_custom_call.1} parent=1 // pred_region
      %414 = dma.done [#allocation11], 32
    $region49: #{tpu_custom_call.1} parent=1 // pred_fallthru
      _
    %415 = vsyncpa [#allocation5], 1
    %416 = vsyncpa [#allocation8], 1
    %417 = vsyncpa [#allocation6], 1
    %418 = vsyncpa [#allocation11], 1

</llo_original>
